<compile_context>
chip_gen: v5e
topology: v5e:2x2
jax: 0.10.0
libtpu: 0.0.40
codegen_flags: <defaults>
</compile_context>

<pallas_src>
import jax
import jax.numpy as jnp
from jax.experimental import pallas as pl
from jax.experimental.pallas import tpu as pltpu

HIDDEN = 256

# Batch-tile ladder (biggest first).  A tile is only used if it yields >= 2 grid steps so that
# software pipelining and (on v7x) 2-TC sharding have something to work with.
_TILE_LADDER = (1024, 512, 256, 128)


def _choose_batch_tile(batch):
    for tb in _TILE_LADDER:
        if batch >= 2 * tb:
            return tb
    # Small batch: a single sublane-aligned block (grid of 1).
    return max(8, -(-batch // 8) * 8)


def qnet_kernel(t_ref, sa_ref, w1t_ref, w1sa_ref, b1_ref,
                w2_ref, b2_ref, w3_ref, b3_ref, out_ref):
    # ---- Layer 1: single MXU pass over the packed [state|action] columns -------------------
    h1 = jnp.dot(sa_ref[...], w1sa_ref[...], preferred_element_type=jnp.float32)
    # K=1 time column: f32 VPU broadcast-multiply (an MXU pass with K=1 would be nearly empty,
    # and keeping it f32 preserves precision on the single time feature).
    h1 = h1 + t_ref[...] * w1t_ref[...]
    h1 = jnp.maximum(h1 + b1_ref[...], 0.0)

    # ---- Layer 2 ------------------------------------------------------------------------------
    h2 = jnp.dot(h1.astype(jnp.bfloat16), w2_ref[...], preferred_element_type=jnp.float32)
    h2 = jnp.maximum(h2 + b2_ref[...], 0.0)
    # Dropout(p=0.5) -> Identity (dropout=False in the module default).

    # ---- Layer 3: Linear(256 -> 1) as VPU multiply + XLU lane-reduce ---------------------------
    # (an N=1 MXU matmul uses one output column but still pays the full push/drain cadence)
    q = jnp.sum(h2 * w3_ref[...], axis=-1, keepdims=True)        # (TB, 1) f32
    out_ref[...] = (q + b3_ref[0]).astype(out_ref.dtype)          # b3 is a scalar in SMEM


def prepare_params(params, state_dim, action_dim):
    """Split / cast the (in,out)-layout params into kernel-ready form (do this once)."""
    w1, b1, w2, b2, w3, b3 = params
    w1_t = w1[0:1, :].astype(jnp.float32)                                    # (1, H) time row, f32
    w1_sa = w1[1:1 + state_dim + action_dim, :].astype(jnp.bfloat16)         # (S+A, H), bf16
    return (w1_t, w1_sa,
            b1.reshape(1, HIDDEN).astype(jnp.float32),
            w2.astype(jnp.bfloat16),
            b2.reshape(1, HIDDEN).astype(jnp.float32),
            w3.reshape(1, HIDDEN).astype(jnp.float32),                       # W3 as a row
            b3.reshape(1).astype(jnp.float32))                               # scalar -> SMEM


def qnetwork_forward(time_steps, states, actions, prepared, core_parallel=True):
    """time_steps: (B, 1), states: (B, S), actions: (B, A) -> (B,)"""
    w1_t, w1_sa, b1, w2, b2, w3_row, b3 = prepared
    B = time_steps.shape[0]
    S = states.shape[1]
    A = actions.shape[1]
    K = S + A

    # Pack [states|actions] once per call (tiny (B, S+A) bf16 array); time column stays f32.
    sa = jnp.concatenate([states, actions], axis=-1).astype(jnp.bfloat16)
    t = time_steps.astype(jnp.float32)

    TB = _choose_batch_tile(B)
    B_pad = -(-B // TB) * TB
    if B_pad != B:
        t = jnp.pad(t, ((0, B_pad - B), (0, 0)))
        sa = jnp.pad(sa, ((0, B_pad - B), (0, 0)))
    steps = B_pad // TB

    batched = lambda i: (i, 0)
    const = lambda i: (0, 0)

    flops = 2 * B_pad * (K * HIDDEN + HIDDEN * HIDDEN + 2 * HIDDEN)
    bytes_accessed = (B_pad * (4 + 2 * K + 4)                         # t, sa, out
                      + K * HIDDEN * 2 + HIDDEN * HIDDEN * 2          # bf16 weights
                      + 4 * HIDDEN * 4 + 4)                           # f32 rows + b3

    def build(batch_sem):
        return pl.pallas_call(
            qnet_kernel,
            out_shape=jax.ShapeDtypeStruct((B_pad, 1), jnp.float32),
            grid=(steps,),
            in_specs=[
                pl.BlockSpec((TB, 1), batched),                       # time column   (f32)
                pl.BlockSpec((TB, K), batched),                       # [state|action](bf16)
                pl.BlockSpec((1, HIDDEN), const),                     # W1 time row   (f32)
                pl.BlockSpec((K, HIDDEN), const),                     # W1 s+a rows   (bf16)
                pl.BlockSpec((1, HIDDEN), const),                     # b1
                pl.BlockSpec((HIDDEN, HIDDEN), const),                # W2            (bf16)
                pl.BlockSpec((1, HIDDEN), const),                     # b2
                pl.BlockSpec((1, HIDDEN), const),                     # W3 row        (f32)
                pl.BlockSpec(memory_space=pltpu.MemorySpace.SMEM),    # b3 scalar
            ],
            out_specs=pl.BlockSpec((TB, 1), batched),
            compiler_params=pltpu.CompilerParams(dimension_semantics=(batch_sem,)),
            cost_estimate=pl.CostEstimate(flops=flops, transcendentals=0,
                                          bytes_accessed=bytes_accessed),
        )(t, sa, w1_t, w1_sa, b1, w2, b2, w3_row, b3)

    if core_parallel and steps >= 2:
        try:
            out = build(pltpu.CORE_PARALLEL)      # genuine 2-TC batch sharding on v7x
        except Exception:                          # single-core chip / older toolchain
            out = build(pltpu.ARBITRARY)
    else:
        out = build(pltpu.ARBITRARY)

    # torch.nn.Flatten(-2) on (B, 1) -> (B,); drop batch padding.
    return out[:B, 0]


def init_params(key, in_dim):
    ks = jax.random.split(key, 6)
    scale1 = 1.0 / jnp.sqrt(in_dim)
    scale2 = 1.0 / jnp.sqrt(HIDDEN)
    w1 = jax.random.uniform(ks[0], (in_dim, HIDDEN), jnp.float32, -scale1, scale1)
    b1 = jax.random.uniform(ks[1], (1, HIDDEN), jnp.float32, -scale1, scale1)
    w2 = jax.random.uniform(ks[2], (HIDDEN, HIDDEN), jnp.float32, -scale2, scale2)
    b2 = jax.random.uniform(ks[3], (1, HIDDEN), jnp.float32, -scale2, scale2)
    w3 = jax.random.uniform(ks[4], (HIDDEN, 1), jnp.float32, -scale2, scale2)
    b3 = jax.random.uniform(ks[5], (1, 1), jnp.float32, -scale2, scale2)
    return (w1, b1, w2, b2, w3, b3)


def reference_forward_f32(time_steps, states, actions, params):
    """Pure-f32 reference of the PyTorch module."""
    w1, b1, w2, b2, w3, b3 = params
    hi = jax.lax.Precision.HIGHEST
    x = jnp.concatenate([time_steps, states, actions], axis=-1)
    h1 = jnp.maximum(jnp.dot(x, w1, precision=hi) + b1, 0.0)
    h2 = jnp.maximum(jnp.dot(h1, w2, precision=hi) + b2, 0.0)
    return (jnp.dot(h2, w3, precision=hi) + b3).reshape(x.shape[0])


def reference_forward_bf16(time_steps, states, actions, params, state_dim, action_dim):
    """Reference that mimics the kernel's bf16 matmul operands (tight comparison)."""
    w1, b1, w2, b2, w3, b3 = params
    sa = jnp.concatenate([states, actions], axis=-1).astype(jnp.bfloat16)
    w1_t = w1[0:1, :]
    w1_sa = w1[1:1 + state_dim + action_dim, :].astype(jnp.bfloat16)
    h1 = jnp.dot(sa, w1_sa, preferred_element_type=jnp.float32)
    h1 = h1 + time_steps * w1_t
    h1 = jnp.maximum(h1 + b1.reshape(1, -1), 0.0)
    h2 = jnp.dot(h1.astype(jnp.bfloat16), w2.astype(jnp.bfloat16),
                 preferred_element_type=jnp.float32)
    h2 = jnp.maximum(h2 + b2.reshape(1, -1), 0.0)
    q = jnp.sum(h2 * w3.reshape(1, HIDDEN), axis=-1) + b3.reshape(())
    return q


if __name__ == "__main__":
    # Small shapes: batch=8, continuous obs dim=8, continuous action dim=4.
    B, S, A = 8, 8, 4
    in_dim = S + A + 1

    key = jax.random.PRNGKey(0)
    k_t, k_s, k_a, k_p, k_t2, k_s2, k_a2 = jax.random.split(key, 7)
    time_steps = jax.random.uniform(k_t, (B, 1), jnp.float32)
    states = jax.random.normal(k_s, (B, S), jnp.float32)
    actions = jax.random.normal(k_a, (B, A), jnp.float32)
    params = init_params(k_p, in_dim)
    prepared = prepare_params(params, S, A)

    out = jax.block_until_ready(qnetwork_forward(time_steps, states, actions, prepared))
    assert out.shape == (B,)
    ref16 = reference_forward_bf16(time_steps, states, actions, params, S, A)
    ref32 = reference_forward_f32(time_steps, states, actions, params)
    # tight check against a reference using the same bf16 matmul operands
    assert jnp.allclose(out, ref16, atol=5e-3, rtol=5e-3)
    # loose check against the pure-f32 module semantics (intentional bf16 weight quantization)
    assert jnp.allclose(out, ref32, atol=5e-2, rtol=5e-2)

    # Ragged, multi-tile batch: exercises zero-padding to a tile multiple, the multi-step grid
    # and (where supported) CORE_PARALLEL sharding of the batch axis across TensorCores.
    B2 = 300
    t2 = jax.random.uniform(k_t2, (B2, 1), jnp.float32)
    s2 = jax.random.normal(k_s2, (B2, S), jnp.float32)
    a2 = jax.random.normal(k_a2, (B2, A), jnp.float32)
    out2 = jax.block_until_ready(qnetwork_forward(t2, s2, a2, prepared))
    assert out2.shape == (B2,)
    ref16_2 = reference_forward_bf16(t2, s2, a2, params, S, A)
    assert jnp.allclose(out2, ref16_2, atol=5e-3, rtol=5e-3)

    print("KERNEL_OK")
</pallas_src>

<mosaic_0001>
module attributes {stable_mosaic.version = 11 : i64} {
  func.func @qnet_kernel(%arg0: i32, %arg1: memref<8x1xf32, #tpu.memory_space<vmem>>, %arg2: memref<8x12xbf16, #tpu.memory_space<vmem>>, %arg3: memref<1x256xf32, #tpu.memory_space<vmem>>, %arg4: memref<12x256xbf16, #tpu.memory_space<vmem>>, %arg5: memref<1x256xf32, #tpu.memory_space<vmem>>, %arg6: memref<256x256xbf16, #tpu.memory_space<vmem>>, %arg7: memref<1x256xf32, #tpu.memory_space<vmem>>, %arg8: memref<1x256xf32, #tpu.memory_space<vmem>>, %arg9: memref<1xf32, #tpu.memory_space<smem>>, %arg10: memref<8x1xf32, #tpu.memory_space<vmem>>) attributes {dimension_semantics = [#tpu.dimension_semantics<arbitrary>], iteration_bounds = array<i64: 1>, scalar_prefetch = 0 : i64, scratch_operands = 0 : i64, tpu.core_type = #tpu.core_type<tc>, window_params = [{transform_indices = @transform_0, window_bounds = array<i64: 8, 1>}, {transform_indices = @transform_1, window_bounds = array<i64: 8, 12>}, {pipeline_mode = #tpu.pipeline_mode<synchronous>, transform_indices = @transform_2, window_bounds = array<i64: 1, 256>}, {pipeline_mode = #tpu.pipeline_mode<synchronous>, transform_indices = @transform_3, window_bounds = array<i64: 12, 256>}, {pipeline_mode = #tpu.pipeline_mode<synchronous>, transform_indices = @transform_4, window_bounds = array<i64: 1, 256>}, {pipeline_mode = #tpu.pipeline_mode<synchronous>, transform_indices = @transform_5, window_bounds = array<i64: 256, 256>}, {pipeline_mode = #tpu.pipeline_mode<synchronous>, transform_indices = @transform_6, window_bounds = array<i64: 1, 256>}, {pipeline_mode = #tpu.pipeline_mode<synchronous>, transform_indices = @transform_7, window_bounds = array<i64: 1, 256>}, {transform_indices = @transform_8, window_bounds = array<i64: 1>}, {transform_indices = @transform_9, window_bounds = array<i64: 8, 1>}]} {
    %c0 = arith.constant 0 : index
    %c0_0 = arith.constant 0 : index
    %0 = vector.load %arg2[%c0, %c0_0] : memref<8x12xbf16, #tpu.memory_space<vmem>>, vector<8x12xbf16>
    %c0_1 = arith.constant 0 : index
    %c0_2 = arith.constant 0 : index
    %1 = vector.load %arg4[%c0_1, %c0_2] : memref<12x256xbf16, #tpu.memory_space<vmem>>, vector<12x256xbf16>
    %cst = arith.constant dense<0.000000e+00> : vector<8x256xf32>
    %2 = tpu.matmul %0, %1, %cst {dimension_numbers = #tpu.dot_dimension_numbers<[1], [0], [0], [1], [0, 0, 1, 1], [], []>} : vector<8x12xbf16>, vector<12x256xbf16>, vector<8x256xf32> -> vector<8x256xf32>
    %c0_3 = arith.constant 0 : index
    %c0_4 = arith.constant 0 : index
    %3 = vector.load %arg1[%c0_3, %c0_4] : memref<8x1xf32, #tpu.memory_space<vmem>>, vector<8x1xf32>
    %c0_5 = arith.constant 0 : index
    %c0_6 = arith.constant 0 : index
    %4 = vector.load %arg3[%c0_5, %c0_6] : memref<1x256xf32, #tpu.memory_space<vmem>>, vector<1x256xf32>
    %5 = vector.broadcast %3 : vector<8x1xf32> to vector<8x256xf32>
    %6 = vector.broadcast %4 : vector<1x256xf32> to vector<8x256xf32>
    %7 = arith.mulf %5, %6 : vector<8x256xf32>
    %8 = arith.addf %2, %7 : vector<8x256xf32>
    %c0_7 = arith.constant 0 : index
    %c0_8 = arith.constant 0 : index
    %9 = vector.load %arg5[%c0_7, %c0_8] : memref<1x256xf32, #tpu.memory_space<vmem>>, vector<1x256xf32>
    %10 = vector.broadcast %9 : vector<1x256xf32> to vector<8x256xf32>
    %11 = arith.addf %8, %10 : vector<8x256xf32>
    %cst_9 = arith.constant 0.000000e+00 : f32
    %12 = vector.broadcast %cst_9 : f32 to vector<8x256xf32>
    %13 = arith.maximumf %11, %12 : vector<8x256xf32>
    %14 = arith.truncf %13 : vector<8x256xf32> to vector<8x256xbf16>
    %c0_10 = arith.constant 0 : index
    %c0_11 = arith.constant 0 : index
    %15 = vector.load %arg6[%c0_10, %c0_11] : memref<256x256xbf16, #tpu.memory_space<vmem>>, vector<256x256xbf16>
    %cst_12 = arith.constant dense<0.000000e+00> : vector<8x256xf32>
    %16 = tpu.matmul %14, %15, %cst_12 {dimension_numbers = #tpu.dot_dimension_numbers<[1], [0], [0], [1], [0, 0, 1, 1], [], []>} : vector<8x256xbf16>, vector<256x256xbf16>, vector<8x256xf32> -> vector<8x256xf32>
    %c0_13 = arith.constant 0 : index
    %c0_14 = arith.constant 0 : index
    %17 = vector.load %arg7[%c0_13, %c0_14] : memref<1x256xf32, #tpu.memory_space<vmem>>, vector<1x256xf32>
    %18 = vector.broadcast %17 : vector<1x256xf32> to vector<8x256xf32>
    %19 = arith.addf %16, %18 : vector<8x256xf32>
    %cst_15 = arith.constant 0.000000e+00 : f32
    %20 = vector.broadcast %cst_15 : f32 to vector<8x256xf32>
    %21 = arith.maximumf %19, %20 : vector<8x256xf32>
    %c0_16 = arith.constant 0 : index
    %c0_17 = arith.constant 0 : index
    %22 = vector.load %arg8[%c0_16, %c0_17] : memref<1x256xf32, #tpu.memory_space<vmem>>, vector<1x256xf32>
    %23 = vector.broadcast %22 : vector<1x256xf32> to vector<8x256xf32>
    %24 = arith.mulf %21, %23 : vector<8x256xf32>
    %cst_18 = arith.constant dense<0.000000e+00> : vector<8xf32>
    %25 = vector.multi_reduction <add>, %24, %cst_18 [1] : vector<8x256xf32> to vector<8xf32>
    %26 = vector.shape_cast %25 : vector<8xf32> to vector<8x1xf32>
    %c0_19 = arith.constant 0 : index
    %27 = memref.load %arg9[%c0_19] : memref<1xf32, #tpu.memory_space<smem>>
    %28 = vector.broadcast %27 : f32 to vector<8x1xf32>
    %29 = arith.addf %26, %28 : vector<8x1xf32>
    %c0_20 = arith.constant 0 : index
    %c0_21 = arith.constant 0 : index
    %30 = vector.load %arg10[%c0_20, %c0_21] : memref<8x1xf32, #tpu.memory_space<vmem>>, vector<8x1xf32>
    tpu.vector_store %arg10[%c0_20, %c0_21], %29 {strides = array<i32>} : memref<8x1xf32, #tpu.memory_space<vmem>>, vector<8x1xf32>,
    return
  }
  func.func @transform_0(%arg0: i32) -> (i32, i32) {
    %c0_i32 = arith.constant 0 : i32
    %c0_i32_0 = arith.constant 0 : i32
    return %arg0, %c0_i32 : i32, i32
  }
  func.func @transform_1(%arg0: i32) -> (i32, i32) {
    %c0_i32 = arith.constant 0 : i32
    %c0_i32_0 = arith.constant 0 : i32
    return %arg0, %c0_i32 : i32, i32
  }
  func.func @transform_2(%arg0: i32) -> (i32, i32) {
    %c0_i32 = arith.constant 0 : i32
    %c0_i32_0 = arith.constant 0 : i32
    %c0_i32_1 = arith.constant 0 : i32
    return %c0_i32, %c0_i32_0 : i32, i32
  }
  func.func @transform_3(%arg0: i32) -> (i32, i32) {
    %c0_i32 = arith.constant 0 : i32
    %c0_i32_0 = arith.constant 0 : i32
    %c0_i32_1 = arith.constant 0 : i32
    return %c0_i32, %c0_i32_0 : i32, i32
  }
  func.func @transform_4(%arg0: i32) -> (i32, i32) {
    %c0_i32 = arith.constant 0 : i32
    %c0_i32_0 = arith.constant 0 : i32
    %c0_i32_1 = arith.constant 0 : i32
    return %c0_i32, %c0_i32_0 : i32, i32
  }
  func.func @transform_5(%arg0: i32) -> (i32, i32) {
    %c0_i32 = arith.constant 0 : i32
    %c0_i32_0 = arith.constant 0 : i32
    %c0_i32_1 = arith.constant 0 : i32
    return %c0_i32, %c0_i32_0 : i32, i32
  }
  func.func @transform_6(%arg0: i32) -> (i32, i32) {
    %c0_i32 = arith.constant 0 : i32
    %c0_i32_0 = arith.constant 0 : i32
    %c0_i32_1 = arith.constant 0 : i32
    return %c0_i32, %c0_i32_0 : i32, i32
  }
  func.func @transform_7(%arg0: i32) -> (i32, i32) {
    %c0_i32 = arith.constant 0 : i32
    %c0_i32_0 = arith.constant 0 : i32
    %c0_i32_1 = arith.constant 0 : i32
    return %c0_i32, %c0_i32_0 : i32, i32
  }
  func.func @transform_8(%arg0: i32) -> i32 {
    %c0_i32 = arith.constant 0 : i32
    %c0_i32_0 = arith.constant 0 : i32
    return %c0_i32 : i32
  }
  func.func @transform_9(%arg0: i32) -> (i32, i32) {
    %c0_i32 = arith.constant 0 : i32
    %c0_i32_0 = arith.constant 0 : i32
    return %arg0, %c0_i32 : i32, i32
  }
}

</mosaic_0001>

<llo_original>
// kernel: tpu_custom_call.1
$region0: #{tpu_custom_call.1}
  #allocation0 [shape = 'u32[]', space=smem, size = 0x4, offset = 0x4, fixed_abs, tag = 'smem constant byte address 0x4 - core index']
  #allocation1 [shape = 'u32[72,128]{1,0:T(1,128)}', space=vmem, size = 0x9000, scoped, tag = 'internal scratch']
  #allocation2 [shape = 'f32[1]{0:T(128)S(6)}', space=smem, size = 0x200, scoped, tag = 'scoped memory for tpu_custom_call.1']
  %s0 = inlined_call_operand.vmem [shape: f32[8,1], index: 0, kind: input, shape index: {}]
  %s1 = inlined_call_operand.vmem [shape: bf16[8,12], index: 1, kind: input, shape index: {}]
  %s2 = inlined_call_operand.vmem [shape: f32[1,256], index: 2, kind: input, shape index: {}]
  %s3 = inlined_call_operand.hbm [shape: bf16[12,256], index: 3, kind: input, shape index: {}]
  %s4 = inlined_call_operand.vmem [shape: f32[1,256], index: 4, kind: input, shape index: {}]
  %s5 = inlined_call_operand.hbm [shape: bf16[256,256], index: 5, kind: input, shape index: {}]
  %s6 = inlined_call_operand.vmem [shape: f32[1,256], index: 6, kind: input, shape index: {}]
  %s7 = inlined_call_operand.vmem [shape: f32[1,256], index: 7, kind: input, shape index: {}]
  %s8 = inlined_call_operand.<no memory space> [shape: f32[1], index: 8, kind: input, shape index: {}]
  %s9 = inlined_call_operand.vmem [shape: f32[8,1], index: 9, kind: output, shape index: {}]
  %s10 = sld [smem:[#allocation0]]
  $region54: #{tpu_custom_call.1} parent=0
    _
  %s12 = ssub.s32 1, %s10
  %s13 = scalar_select 0, %s12, %s10
  %14 = sst [smem:[#allocation2]] %s8
  $region1: #{tpu_custom_call.1} parent=0
    #allocation3 [shape = 'u8[8192]{0}', space=vmem, size = 0x2000, scoped, tag = 'input window, operand 3, single buffered']
    #allocation4 [shape = 's32[1]{0}', space=sflag, size = 0x4, scoped, tag = 'scoped memory for tpu_custom_call.1']
    #allocation5 [shape = 'u8[131072]{0}', space=vmem, size = 0x20000, scoped, tag = 'input window, operand 5, single buffered']
    #allocation6 [shape = 's32[1]{0}', space=sflag, size = 0x4, scoped, tag = 'scoped memory for tpu_custom_call.1']
    %15 = vsyncpa [#allocation4], 0
    %16 = vsyncpa [#allocation6], 0
    // Predicated region
    $region2: #{tpu_custom_call.1} parent=1 // pred_check
      _
    $region3: #{tpu_custom_call.1} parent=1 // pred_check_branch
      %18 = sbr.rel (0) target = $region5
    $region4: #{tpu_custom_call.1} parent=1 // pred_region
      _
    $region5: #{tpu_custom_call.1} parent=1 // pred_fallthru
      _
    // Predicated region
    $region6: #{tpu_custom_call.1} parent=1 // pred_check
      _
    $region7: #{tpu_custom_call.1} parent=1 // pred_check_branch
      %20 = sbr.rel (0) target = $region9
    $region8: #{tpu_custom_call.1} parent=1 // pred_region
      _
    $region9: #{tpu_custom_call.1} parent=1 // pred_fallthru
      _
    // Predicated region
    $region10: #{tpu_custom_call.1} parent=1 // pred_check
      _
    $region11: #{tpu_custom_call.1} parent=1 // pred_check_branch
      %22 = sbr.rel (0) target = $region13
    $region12: #{tpu_custom_call.1} parent=1 // pred_region
      _
    $region13: #{tpu_custom_call.1} parent=1 // pred_fallthru
      _
    // Predicated region
    $region14: #{tpu_custom_call.1} parent=1 // pred_check
      _
    $region15: #{tpu_custom_call.1} parent=1 // pred_check_branch
      %24 = sbr.rel (0) target = $region17
    $region16: #{tpu_custom_call.1} parent=1 // pred_region
      %26 = vsyncadd [#allocation4], 0
      %s27 = sshll.u32 %s3, 4
      %s28 = int_to_ptr.hbm [resolvable:$true] %s27
      %s29 = sshll.u32 [#allocation3], 4
      %s30 = int_to_ptr.vmem [resolvable:$true] %s29
      %35 = dma.hbm_to_vmem [thread:$0]  %s28, 256, %s30, [#allocation4], 128, 128, 8
    $region17: #{tpu_custom_call.1} parent=1 // pred_fallthru
      _
    // Predicated region
    $region18: #{tpu_custom_call.1} parent=1 // pred_check
      _
    $region19: #{tpu_custom_call.1} parent=1 // pred_check_branch
      %37 = sbr.rel (0) target = $region21
    $region20: #{tpu_custom_call.1} parent=1 // pred_region
      _
    $region21: #{tpu_custom_call.1} parent=1 // pred_fallthru
      _
    // Predicated region
    $region22: #{tpu_custom_call.1} parent=1 // pred_check
      _
    $region23: #{tpu_custom_call.1} parent=1 // pred_check_branch
      %39 = sbr.rel (0) target = $region25
    $region24: #{tpu_custom_call.1} parent=1 // pred_region
      %41 = vsyncadd [#allocation6], 0
      %s42 = sshll.u32 %s5, 4
      %s43 = int_to_ptr.hbm [resolvable:$true] %s42
      %s44 = sshll.u32 [#allocation5], 4
      %s45 = int_to_ptr.vmem [resolvable:$true] %s44
      %50 = dma.hbm_to_vmem [thread:$0]  %s43, 4096, %s45, [#allocation6], 128, 128, 8
    $region25: #{tpu_custom_call.1} parent=1 // pred_fallthru
      _
    // Predicated region
    $region26: #{tpu_custom_call.1} parent=1 // pred_check
      _
    $region27: #{tpu_custom_call.1} parent=1 // pred_check_branch
      %52 = sbr.rel (0) target = $region29
    $region28: #{tpu_custom_call.1} parent=1 // pred_region
      _
    $region29: #{tpu_custom_call.1} parent=1 // pred_fallthru
      _
    // Predicated region
    $region30: #{tpu_custom_call.1} parent=1 // pred_check
      _
    $region31: #{tpu_custom_call.1} parent=1 // pred_check_branch
      %54 = sbr.rel (0) target = $region33
    $region32: #{tpu_custom_call.1} parent=1 // pred_region
      _
    $region33: #{tpu_custom_call.1} parent=1 // pred_fallthru
      _
    // Predicated region
    $region34: #{tpu_custom_call.1} parent=1 // pred_check
      _
    $region35: #{tpu_custom_call.1} parent=1 // pred_check_branch
      %56 = sbr.rel (0) target = $region37
    $region36: #{tpu_custom_call.1} parent=1 // pred_region
      _
    $region37: #{tpu_custom_call.1} parent=1 // pred_fallthru
      _
    // Predicated region
    $region38: #{tpu_custom_call.1} parent=1 // pred_check
      _
    $region39: #{tpu_custom_call.1} parent=1 // pred_check_branch
      %58 = sbr.rel (0) target = $region41
    $region40: #{tpu_custom_call.1} parent=1 // pred_region
      %60 = dma.done [#allocation4], 256
    $region41: #{tpu_custom_call.1} parent=1 // pred_fallthru
      _
    // Predicated region
    $region42: #{tpu_custom_call.1} parent=1 // pred_check
      _
    $region43: #{tpu_custom_call.1} parent=1 // pred_check_branch
      %62 = sbr.rel (0) target = $region45
    $region44: #{tpu_custom_call.1} parent=1 // pred_region
      %64 = dma.done [#allocation6], 4096
    $region45: #{tpu_custom_call.1} parent=1 // pred_fallthru
      _
    %v66 = vld [vmem:[%s1] sm:$0xf]
    %v67 = vld [vmem:[#allocation3] sm:$0xff]
    %v68 = vld [vmem:[#allocation3 + $0x8] sm:$0x33]
    %v69 = vld [vmem:[%s0] sm:$0xff]
    %v70 = vld [vmem:[%s2] sm:$0x3]
    %72 = vset.pattern.permute.xlu0 0
    %73 = vperm.xlu0 %72, %v69
    %v74 = vpop.permute.xlu0 %73
    %v77 = vperm.slane %v70, 0
    %v78 = vperm.slane %v70, 1
    %v81 = vmul.f32 %v74, %v77
    %v82 = vmul.f32 %v74, %v78
    %v85 = vunpack.c.l.b16 %v67
    %v86 = vunpack.c.h.b16 %v67
    %v87 = vunpack.c.l.b16 %v68
    %v88 = vunpack.c.h.b16 %v68
    %v89 = vpack.c.b16 %v87, %v85
    %v90 = vpack.c.b16 %v88, %v86
    %vm91 = vcmask 97280
    %v93 = vsel %vm91, %v66, 0
    %vm95 = vcmask 1045504
    %v97 = vsel %vm95, %v89, 0
    %v100 = vsel %vm95, %v90, 0
    %102 = vmatpush.bf16.msra.mxu0 0
    %103 = vmatpush.bf16.msra.mxu0 0
    %104 = vmatpush.bf16.msra.mxu0 0
    %105 = vmatpush.bf16.msra.mxu0 0
    %106 = vmatpush.bf16.msra.mxu0 0
    %107 = vmatpush.bf16.msra.mxu0 0
    %108 = vmatpush.bf16.msra.mxu0 0
    %109 = vmatpush.bf16.msra.mxu0 %v97
    %110 = vmatmul.bf16.gmra.mxu0 %v93
    %v111 = vpop.f32.mrf.mxu0
    %v112 = vadd.f32 %v81, %v111
    %v113 = vpop.f32.mrf.mxu0
    %114 = vdwg.mxu0
    %115 = vmatpush.bf16.msra.mxu0 0
    %116 = vmatpush.bf16.msra.mxu0 0
    %117 = vmatpush.bf16.msra.mxu0 0
    %118 = vmatpush.bf16.msra.mxu0 0
    %119 = vmatpush.bf16.msra.mxu0 0
    %120 = vmatpush.bf16.msra.mxu0 0
    %121 = vmatpush.bf16.msra.mxu0 0
    %122 = vmatpush.bf16.msra.mxu0 %v100
    %123 = vmatmul.bf16.gmra.mxu0 %v93
    %v124 = vpop.f32.mrf.mxu0
    %v125 = vadd.f32 %v82, %v124
    %v126 = vpop.f32.mrf.mxu0
    %127 = vdwg.mxu0
    %v128 = vld [vmem:[%s4] sm:$0x3]
    %v130 = vperm.slane %v128, 0
    %v131 = vperm.slane %v128, 1
    %v134 = vadd.f32 %v112, %v130
    %v135 = vadd.f32 %v125, %v131
    %v136 = vmax.f32 %v134, 0.0
    %v137 = vmax.f32 %v135, 0.0
    %v138 = vpack.c.bf16 %v136, %v136
    %v139 = vpack.c.bf16 %v137, %v137
    %v140 = vld [vmem:[#allocation5] sm:$0xff]
    %v141 = vld [vmem:[#allocation5 + $0x8] sm:$0xff]
    %v142 = vld [vmem:[#allocation5 + $0x10] sm:$0xff]
    %v143 = vld [vmem:[#allocation5 + $0x18] sm:$0xff]
    %v144 = vld [vmem:[#allocation5 + $0x20] sm:$0xff]
    %v145 = vld [vmem:[#allocation5 + $0x28] sm:$0xff]
    %v146 = vld [vmem:[#allocation5 + $0x30] sm:$0xff]
    %v147 = vld [vmem:[#allocation5 + $0x38] sm:$0xff]
    %v148 = vld [vmem:[#allocation5 + $0x40] sm:$0xff]
    %v149 = vld [vmem:[#allocation5 + $0x48] sm:$0xff]
    %v150 = vld [vmem:[#allocation5 + $0x50] sm:$0xff]
    %v151 = vld [vmem:[#allocation5 + $0x58] sm:$0xff]
    %v152 = vld [vmem:[#allocation5 + $0x60] sm:$0xff]
    %v153 = vld [vmem:[#allocation5 + $0x68] sm:$0xff]
    %v154 = vld [vmem:[#allocation5 + $0x70] sm:$0xff]
    %v155 = vld [vmem:[#allocation5 + $0x78] sm:$0xff]
    %v156 = vld [vmem:[#allocation5 + $0x80] sm:$0xff]
    %v157 = vld [vmem:[#allocation5 + $0x88] sm:$0xff]
    %v158 = vld [vmem:[#allocation5 + $0x90] sm:$0xff]
    %v159 = vld [vmem:[#allocation5 + $0x98] sm:$0xff]
    %v160 = vld [vmem:[#allocation5 + $0xa0] sm:$0xff]
    %v161 = vld [vmem:[#allocation5 + $0xa8] sm:$0xff]
    %v162 = vld [vmem:[#allocation5 + $0xb0] sm:$0xff]
    %v163 = vld [vmem:[#allocation5 + $0xb8] sm:$0xff]
    %v164 = vld [vmem:[#allocation5 + $0xc0] sm:$0xff]
    %v165 = vld [vmem:[#allocation5 + $0xc8] sm:$0xff]
    %v166 = vld [vmem:[#allocation5 + $0xd0] sm:$0xff]
    %v167 = vld [vmem:[#allocation5 + $0xd8] sm:$0xff]
    %v168 = vld [vmem:[#allocation5 + $0xe0] sm:$0xff]
    %v169 = vld [vmem:[#allocation5 + $0xe8] sm:$0xff]
    %v170 = vld [vmem:[#allocation5 + $0xf0] sm:$0xff]
    %v171 = vld [vmem:[#allocation5 + $0xf8] sm:$0xff]
    %v172 = vld [vmem:[%s6] sm:$0x3]
    %v174 = vperm.slane %v172, 0
    %v175 = vperm.slane %v172, 1
    %v210 = vunpack.c.l.b16 %v140
    %v211 = vunpack.c.h.b16 %v140
    %v212 = vunpack.c.l.b16 %v141
    %v213 = vunpack.c.h.b16 %v141
    %v214 = vunpack.c.l.b16 %v142
    %v215 = vunpack.c.h.b16 %v142
    %v216 = vunpack.c.l.b16 %v143
    %v217 = vunpack.c.h.b16 %v143
    %v218 = vunpack.c.l.b16 %v144
    %v219 = vunpack.c.h.b16 %v144
    %v220 = vunpack.c.l.b16 %v145
    %v221 = vunpack.c.h.b16 %v145
    %v222 = vunpack.c.l.b16 %v146
    %v223 = vunpack.c.h.b16 %v146
    %v224 = vunpack.c.l.b16 %v147
    %v225 = vunpack.c.h.b16 %v147
    %v226 = vunpack.c.l.b16 %v148
    %v227 = vunpack.c.h.b16 %v148
    %v228 = vunpack.c.l.b16 %v149
    %v229 = vunpack.c.h.b16 %v149
    %v230 = vunpack.c.l.b16 %v150
    %v231 = vunpack.c.h.b16 %v150
    %v232 = vunpack.c.l.b16 %v151
    %v233 = vunpack.c.h.b16 %v151
    %v234 = vunpack.c.l.b16 %v152
    %v235 = vunpack.c.h.b16 %v152
    %v236 = vunpack.c.l.b16 %v153
    %v237 = vunpack.c.h.b16 %v153
    %v238 = vunpack.c.l.b16 %v154
    %v239 = vunpack.c.h.b16 %v154
    %v240 = vunpack.c.l.b16 %v155
    %v241 = vunpack.c.h.b16 %v155
    %v242 = vunpack.c.l.b16 %v156
    %v243 = vunpack.c.h.b16 %v156
    %v244 = vunpack.c.l.b16 %v157
    %v245 = vunpack.c.h.b16 %v157
    %v246 = vunpack.c.l.b16 %v158
    %v247 = vunpack.c.h.b16 %v158
    %v248 = vunpack.c.l.b16 %v159
    %v249 = vunpack.c.h.b16 %v159
    %v250 = vunpack.c.l.b16 %v160
    %v251 = vunpack.c.h.b16 %v160
    %v252 = vunpack.c.l.b16 %v161
    %v253 = vunpack.c.h.b16 %v161
    %v254 = vunpack.c.l.b16 %v162
    %v255 = vunpack.c.h.b16 %v162
    %v256 = vunpack.c.l.b16 %v163
    %v257 = vunpack.c.h.b16 %v163
    %v258 = vunpack.c.l.b16 %v164
    %v259 = vunpack.c.h.b16 %v164
    %v260 = vunpack.c.l.b16 %v165
    %v261 = vunpack.c.h.b16 %v165
    %v262 = vunpack.c.l.b16 %v166
    %v263 = vunpack.c.h.b16 %v166
    %v264 = vunpack.c.l.b16 %v167
    %v265 = vunpack.c.h.b16 %v167
    %v266 = vunpack.c.l.b16 %v168
    %v267 = vunpack.c.h.b16 %v168
    %v268 = vunpack.c.l.b16 %v169
    %v269 = vunpack.c.h.b16 %v169
    %v270 = vunpack.c.l.b16 %v170
    %v271 = vunpack.c.h.b16 %v170
    %v272 = vunpack.c.l.b16 %v171
    %v273 = vunpack.c.h.b16 %v171
    %v274 = vpack.c.b16 %v212, %v210
    %v275 = vpack.c.b16 %v213, %v211
    %v276 = vpack.c.b16 %v216, %v214
    %v277 = vpack.c.b16 %v217, %v215
    %v278 = vpack.c.b16 %v220, %v218
    %v279 = vpack.c.b16 %v221, %v219
    %v280 = vpack.c.b16 %v224, %v222
    %v281 = vpack.c.b16 %v225, %v223
    %v282 = vpack.c.b16 %v228, %v226
    %v283 = vpack.c.b16 %v229, %v227
    %v284 = vpack.c.b16 %v232, %v230
    %v285 = vpack.c.b16 %v233, %v231
    %v286 = vpack.c.b16 %v236, %v234
    %v287 = vpack.c.b16 %v237, %v235
    %v288 = vpack.c.b16 %v240, %v238
    %v289 = vpack.c.b16 %v241, %v239
    %v290 = vpack.c.b16 %v244, %v242
    %v291 = vpack.c.b16 %v245, %v243
    %v292 = vpack.c.b16 %v248, %v246
    %v293 = vpack.c.b16 %v249, %v247
    %v294 = vpack.c.b16 %v252, %v250
    %v295 = vpack.c.b16 %v253, %v251
    %v296 = vpack.c.b16 %v256, %v254
    %v297 = vpack.c.b16 %v257, %v255
    %v298 = vpack.c.b16 %v260, %v258
    %v299 = vpack.c.b16 %v261, %v259
    %v300 = vpack.c.b16 %v264, %v262
    %v301 = vpack.c.b16 %v265, %v263
    %v302 = vpack.c.b16 %v268, %v266
    %v303 = vpack.c.b16 %v269, %v267
    %v304 = vpack.c.b16 %v272, %v270
    %v305 = vpack.c.b16 %v273, %v271
    %338 = vmatpush.bf16.msra.mxu0 %v288
    %339 = vmatpush.bf16.msra.mxu0 %v286
    %340 = vmatpush.bf16.msra.mxu0 %v284
    %341 = vmatpush.bf16.msra.mxu0 %v282
    %342 = vmatpush.bf16.msra.mxu0 %v280
    %343 = vmatpush.bf16.msra.mxu0 %v278
    %344 = vmatpush.bf16.msra.mxu0 %v276
    %345 = vmatpush.bf16.msra.mxu0 %v274
    %346 = vmatmul.bf16.gmra.mxu0 %v138
    %v347 = vpop.f32.mrf.mxu0
    %v348 = vadd.f32 %v174, %v347
    %v349 = vpop.f32.mrf.mxu0
    %350 = vdwg.mxu0
    %351 = vmatpush.bf16.msra.mxu0 %v304
    %352 = vmatpush.bf16.msra.mxu0 %v302
    %353 = vmatpush.bf16.msra.mxu0 %v300
    %354 = vmatpush.bf16.msra.mxu0 %v298
    %355 = vmatpush.bf16.msra.mxu0 %v296
    %356 = vmatpush.bf16.msra.mxu0 %v294
    %357 = vmatpush.bf16.msra.mxu0 %v292
    %358 = vmatpush.bf16.msra.mxu0 %v290
    %359 = vmatmul.bf16.gmra.mxu0 %v139
    %v360 = vpop.f32.mrf.mxu0
    %v361 = vadd.f32 %v348, %v360
    %v362 = vpop.f32.mrf.mxu0
    %363 = vdwg.mxu0
    %364 = vmatpush.bf16.msra.mxu0 %v289
    %365 = vmatpush.bf16.msra.mxu0 %v287
    %366 = vmatpush.bf16.msra.mxu0 %v285
    %367 = vmatpush.bf16.msra.mxu0 %v283
    %368 = vmatpush.bf16.msra.mxu0 %v281
    %369 = vmatpush.bf16.msra.mxu0 %v279
    %370 = vmatpush.bf16.msra.mxu0 %v277
    %371 = vmatpush.bf16.msra.mxu0 %v275
    %372 = vmatmul.bf16.gmra.mxu0 %v138
    %v373 = vpop.f32.mrf.mxu0
    %v374 = vadd.f32 %v175, %v373
    %v375 = vpop.f32.mrf.mxu0
    %376 = vdwg.mxu0
    %377 = vmatpush.bf16.msra.mxu0 %v305
    %378 = vmatpush.bf16.msra.mxu0 %v303
    %379 = vmatpush.bf16.msra.mxu0 %v301
    %380 = vmatpush.bf16.msra.mxu0 %v299
    %381 = vmatpush.bf16.msra.mxu0 %v297
    %382 = vmatpush.bf16.msra.mxu0 %v295
    %383 = vmatpush.bf16.msra.mxu0 %v293
    %384 = vmatpush.bf16.msra.mxu0 %v291
    %385 = vmatmul.bf16.gmra.mxu0 %v139
    %v386 = vpop.f32.mrf.mxu0
    %v387 = vadd.f32 %v374, %v386
    %v388 = vpop.f32.mrf.mxu0
    %389 = vdwg.mxu0
    %v390 = vmax.f32 %v361, 0.0
    %v391 = vmax.f32 %v387, 0.0
    %v392 = vld [vmem:[%s7] sm:$0x3]
    %v394 = vperm.slane %v392, 0
    %v395 = vperm.slane %v392, 1
    %v398 = vmul.f32 %v390, %v394
    %v399 = vmul.f32 %v391, %v395
    %v400 = vadd.f32 %v398, %v399
    %401 = vadd.xlane.f32.xlu0 %v400
    %v402 = vpop.xlane.xlu0 %401
    %s403 = sld [smem:[#allocation2]]
    %v404 = vstv %s403
    %v405 = vadd.f32 %v402, %v404
    %vm406 = vcmask 7168
    %407 = vst.msk [vmem:[%s9] sm:$0xff] %vm406, %v405
    // Predicated region
    $region46: #{tpu_custom_call.1} parent=1 // pred_check
      _
    $region47: #{tpu_custom_call.1} parent=1 // pred_check_branch
      %409 = sbr.rel (0) target = $region49
    $region48: #{tpu_custom_call.1} parent=1 // pred_region
      _
    $region49: #{tpu_custom_call.1} parent=1 // pred_fallthru
      _
    // Predicated region
    $region50: #{tpu_custom_call.1} parent=1 // pred_check
      _
    $region51: #{tpu_custom_call.1} parent=1 // pred_check_branch
      %411 = sbr.rel (0) target = $region53
    $region52: #{tpu_custom_call.1} parent=1 // pred_region
      _
    $region53: #{tpu_custom_call.1} parent=1 // pred_fallthru
      _
    %412 = vsyncpa [#allocation4], 1
    %413 = vsyncpa [#allocation6], 1

</llo_original>
